<compile_context>
chip_gen: v7x
topology: tpu7x:2x2x1
jax: 0.10.0
libtpu: 0.0.40
codegen_flags: <defaults>
</compile_context>

<pallas_src>
from functools import partial

import jax
import jax.numpy as jnp
from jax.experimental import pallas as pl
from jax.experimental.pallas import tpu as pltpu


def _round_up(x, m):
    return (x + m - 1) // m * m


def _joint_kernel(f_pad, text_dim, small_k,
                  t_ref, i_ref, w_go_ref, b_go_ref,
                  w1_ref, b1_ref, w2_ref, b2_ref, out_ref):
    # TODO(synk): text_module / image_module are external, unspecified feature
    # extractors; their outputs are the kernel's `text` / `image` inputs.
    cd = w_go_ref.dtype  # MXU operand dtype (bf16 recommended)

    # ReLU on modality features; elementwise epilogue math kept in f32.
    t = jnp.maximum(t_ref[...].astype(jnp.float32), 0.0)
    im = jnp.maximum(i_ref[...].astype(jnp.float32), 0.0)

    if small_k:
        # Tiny per-modality K: one MXU pass over the concatenated modality axis.
        c = jnp.concatenate([t, im], axis=1).astype(cd)
        go = jnp.dot(c, w_go_ref[...], preferred_element_type=jnp.float32)
    else:
        # 128-aligned modality dims: split form, no in-VMEM concat copy.
        go = jnp.dot(t.astype(cd), w_go_ref[:text_dim, :],
                     preferred_element_type=jnp.float32)
        go = go + jnp.dot(im.astype(cd), w_go_ref[text_dim:, :],
                          preferred_element_type=jnp.float32)
    go = go + b_go_ref[...]                                   # (TB, 2*Fp), f32

    gate = jax.nn.sigmoid(go[:, :f_pad])                      # lane-aligned split
    outp = go[:, f_pad:]
    # TODO(synk): dropout is identity (eval mode); training-mode PRNG masking
    # (pltpu.prng_seed / prng_random_bits) not implemented.
    fused = jnp.maximum(gate * outp, 0.0)                     # relu(gate * output)

    hidden = jnp.dot(fused.astype(cd), w1_ref[...],
                     preferred_element_type=jnp.float32)
    hidden = jnp.maximum(hidden + b1_ref[...], 0.0)           # relu(fc1)

    logits = jnp.dot(hidden.astype(cd), w2_ref[...],
                     preferred_element_type=jnp.float32)
    out_ref[...] = (logits + b2_ref[...]).astype(out_ref.dtype)  # fc2, f32 out


def prepare_params(wg, bg, wo, bo, w1, b1, w2, b2, compute_dtype=jnp.bfloat16):
    """One-time param prep: fuse gate/output Linears into one matmul, pad
    F/H/C up to multiples of 128 (lane alignment + lane-dense logits), and
    store matmul weights in the MXU operand dtype (biases stay f32)."""
    d_in, f = wg.shape
    h = w1.shape[1]
    c = w2.shape[1]
    fp = _round_up(f, 128)
    hp = _round_up(h, 128)
    cp = _round_up(c, 128)

    def padc(a, cols):
        return jnp.pad(a, ((0, 0), (0, cols - a.shape[1])))

    def padv(v, n):
        return jnp.pad(v, (0, n - v.shape[0]))

    # Fused gate|output projection: (D, 2*Fp), bias (1, 2*Fp).
    w_go = jnp.concatenate([padc(wg, fp), padc(wo, fp)], axis=1).astype(compute_dtype)
    b_go = jnp.concatenate([padv(bg, fp), padv(bo, fp)]).reshape(1, 2 * fp).astype(jnp.float32)

    w1p = jnp.pad(w1, ((0, fp - f), (0, hp - h))).astype(compute_dtype)   # (Fp, Hp)
    b1p = padv(b1, hp).reshape(1, hp).astype(jnp.float32)
    w2p = jnp.pad(w2, ((0, hp - h), (0, cp - c))).astype(compute_dtype)   # (Hp, Cp)
    b2p = padv(b2, cp).reshape(1, cp).astype(jnp.float32)
    return (w_go, b_go, w1p, b1p, w2p, b2p, fp, hp, cp)


def _pick_batch_tile(batch):
    if batch > 512:
        return 512                    # big streaming tiles (v5e/v6e sweet spot)
    if batch >= 16 and batch % 16 == 0:
        return batch // 2             # >=2 grid programs -> both v7x TCs busy
    return batch                      # single full-array block


def joint_forward(text, image, params, num_classes):
    """text: (B, Dt), image: (B, Di) feature tensors (ideally bf16).
    params: output of prepare_params.  Returns f32 logits (B, num_classes)."""
    w_go, b_go, w1p, b1p, w2p, b2p, fp, hp, cp = params
    batch, dt = text.shape
    di = image.shape[1]
    d = dt + di
    f2 = 2 * fp
    small_k = (dt % 128 != 0) or (di % 128 != 0)

    tb = _pick_batch_tile(batch)
    grid = (pl.cdiv(batch, tb),)

    w_item = jnp.dtype(w_go.dtype).itemsize
    a_item = jnp.dtype(text.dtype).itemsize
    weight_bytes = (w_go.size + w1p.size + w2p.size) * w_item \
        + (b_go.size + b1p.size + b2p.size) * 4
    # Resident weights (single-buffered) + double-buffered activation/out tiles
    # + in-kernel f32 temporaries, with slack.  Capped at 64 MiB (v7x per-TC VMEM).
    vmem_needed = (weight_bytes
                   + 2 * tb * (dt + di) * a_item
                   + 2 * tb * cp * 4
                   + tb * (d + f2 + fp + hp + cp) * 4
                   + (2 << 20))
    vmem_limit = int(min(max(vmem_needed, 32 << 20), 64 << 20))

    flops = 2 * batch * (d * f2 + fp * hp + hp * cp)
    bytes_accessed = int(text.size * a_item + image.size * a_item
                         + weight_bytes + batch * cp * 4)
    cost = pl.CostEstimate(flops=flops, transcendentals=batch * fp,
                           bytes_accessed=bytes_accessed)

    res_spec = lambda shape: pl.BlockSpec(shape, lambda i: (0, 0),
                                          pipeline_mode=pl.Buffered(1))

    out = pl.pallas_call(
        partial(_joint_kernel, fp, dt, small_k),
        out_shape=jax.ShapeDtypeStruct((batch, cp), jnp.float32),
        grid_spec=pltpu.PrefetchScalarGridSpec(
            num_scalar_prefetch=0,
            grid=grid,
            in_specs=[
                pl.BlockSpec((tb, dt), lambda i: (i, 0)),   # text features
                pl.BlockSpec((tb, di), lambda i: (i, 0)),   # image features
                res_spec((d, f2)),                          # fused gate|output W
                res_spec((1, f2)),                          # fused bias
                res_spec((fp, hp)),                         # fc1 weight
                res_spec((1, hp)),                          # fc1 bias
                res_spec((hp, cp)),                         # fc2 weight (padded C)
                res_spec((1, cp)),                          # fc2 bias
            ],
            out_specs=pl.BlockSpec((tb, cp), lambda i: (i, 0)),
        ),
        compiler_params=pltpu.CompilerParams(
            dimension_semantics=("parallel",),
            vmem_limit_bytes=vmem_limit),
        cost_estimate=cost,
    )(text, image, w_go, b_go, w1p, b1p, w2p, b2p)
    return out[:, :num_classes]


def reference(text, image, wg, bg, wo, bo, w1, b1, w2, b2, quant_dtype=None):
    """Pure-JAX reference.  If quant_dtype is given, mirrors the kernel's
    operand quantization (bf16 matmul inputs, f32 accumulation/epilogue)."""
    def q(x):
        return x if quant_dtype is None else x.astype(quant_dtype).astype(jnp.float32)
    t = jnp.maximum(text, 0.0)
    im = jnp.maximum(image, 0.0)
    combined = q(jnp.concatenate([t, im], axis=1))
    gate = jax.nn.sigmoid(combined @ q(wg) + bg)
    outp = combined @ q(wo) + bo
    fused = q(jnp.maximum(gate * outp, 0.0))
    hidden = q(jnp.maximum(fused @ q(w1) + b1, 0.0))
    return hidden @ q(w2) + b2


if __name__ == "__main__":
    # Small shapes consistent with the module's forward.
    B = 2
    text_dim = 16
    image_dim = 16
    fusion_output_size = 32
    hidden_size = 64
    num_classes = 2
    D = text_dim + image_dim

    key = jax.random.PRNGKey(0)
    ks = jax.random.split(key, 10)

    # Inputs stand for text_module(text) / image_module(image) outputs.
    text = jax.random.normal(ks[0], (B, text_dim), dtype=jnp.float32)
    image = jax.random.normal(ks[1], (B, image_dim), dtype=jnp.float32)

    # Linear weights stored transposed: (in, out).
    wg = jax.random.normal(ks[2], (D, fusion_output_size), dtype=jnp.float32) * 0.1
    bg = jax.random.normal(ks[3], (fusion_output_size,), dtype=jnp.float32) * 0.1
    wo = jax.random.normal(ks[4], (D, fusion_output_size), dtype=jnp.float32) * 0.1
    bo = jax.random.normal(ks[5], (fusion_output_size,), dtype=jnp.float32) * 0.1
    w1 = jax.random.normal(ks[6], (fusion_output_size, hidden_size), dtype=jnp.float32) * 0.1
    b1 = jax.random.normal(ks[7], (hidden_size,), dtype=jnp.float32) * 0.1
    w2 = jax.random.normal(ks[8], (hidden_size, num_classes), dtype=jnp.float32) * 0.1
    b2 = jax.random.normal(ks[9], (num_classes,), dtype=jnp.float32) * 0.1

    # One-time parameter prep: fuse + pad + cast to bf16 MXU operands.
    compute_dtype = jnp.bfloat16
    params = prepare_params(wg, bg, wo, bo, w1, b1, w2, b2, compute_dtype)

    logits = joint_forward(text.astype(compute_dtype), image.astype(compute_dtype),
                           params, num_classes)
    logits = jax.block_until_ready(logits)

    ref = reference(text, image, wg, bg, wo, bo, w1, b1, w2, b2,
                    quant_dtype=compute_dtype)
    assert logits.shape == (B, num_classes)
    assert logits.dtype == jnp.float32
    assert jnp.allclose(logits, ref, atol=2e-2, rtol=2e-2), "mismatch vs reference"

    # TODO(synk): loss_fn(logits, label) path not implemented (label=None branch only).
    print("KERNEL_OK")
</pallas_src>

<mosaic_0001>
module attributes {stable_mosaic.version = 11 : i64} {
  func.func @_joint_kernel(%arg0: i32, %arg1: memref<2x16xbf16, #tpu.memory_space<vmem>>, %arg2: memref<2x16xbf16, #tpu.memory_space<vmem>>, %arg3: memref<32x256xbf16, #tpu.memory_space<vmem>>, %arg4: memref<1x256xf32, #tpu.memory_space<vmem>>, %arg5: memref<128x128xbf16, #tpu.memory_space<vmem>>, %arg6: memref<1x128xf32, #tpu.memory_space<vmem>>, %arg7: memref<128x128xbf16, #tpu.memory_space<vmem>>, %arg8: memref<1x128xf32, #tpu.memory_space<vmem>>, %arg9: memref<2x128xf32, #tpu.memory_space<vmem>>) attributes {dimension_semantics = [#tpu.dimension_semantics<parallel>], iteration_bounds = array<i64: 1>, scalar_prefetch = 0 : i64, scratch_operands = 0 : i64, tpu.core_type = #tpu.core_type<tc>, window_params = [{transform_indices = @transform_0, window_bounds = array<i64: 2, 16>}, {transform_indices = @transform_1, window_bounds = array<i64: 2, 16>}, {pipeline_mode = #tpu.pipeline_mode<synchronous>, transform_indices = @transform_2, window_bounds = array<i64: 32, 256>}, {pipeline_mode = #tpu.pipeline_mode<synchronous>, transform_indices = @transform_3, window_bounds = array<i64: 1, 256>}, {pipeline_mode = #tpu.pipeline_mode<synchronous>, transform_indices = @transform_4, window_bounds = array<i64: 128, 128>}, {pipeline_mode = #tpu.pipeline_mode<synchronous>, transform_indices = @transform_5, window_bounds = array<i64: 1, 128>}, {pipeline_mode = #tpu.pipeline_mode<synchronous>, transform_indices = @transform_6, window_bounds = array<i64: 128, 128>}, {pipeline_mode = #tpu.pipeline_mode<synchronous>, transform_indices = @transform_7, window_bounds = array<i64: 1, 128>}, {transform_indices = @transform_8, window_bounds = array<i64: 2, 128>}]} {
    %c0 = arith.constant 0 : index
    %c0_0 = arith.constant 0 : index
    %0 = vector.load %arg1[%c0, %c0_0] : memref<2x16xbf16, #tpu.memory_space<vmem>>, vector<2x16xbf16>
    %1 = arith.extf %0 : vector<2x16xbf16> to vector<2x16xf32>
    %cst = arith.constant 0.000000e+00 : f32
    %2 = vector.broadcast %cst : f32 to vector<2x16xf32>
    %3 = arith.maximumf %1, %2 : vector<2x16xf32>
    %c0_1 = arith.constant 0 : index
    %c0_2 = arith.constant 0 : index
    %4 = vector.load %arg2[%c0_1, %c0_2] : memref<2x16xbf16, #tpu.memory_space<vmem>>, vector<2x16xbf16>
    %5 = arith.extf %4 : vector<2x16xbf16> to vector<2x16xf32>
    %cst_3 = arith.constant 0.000000e+00 : f32
    %6 = vector.broadcast %cst_3 : f32 to vector<2x16xf32>
    %7 = arith.maximumf %5, %6 : vector<2x16xf32>
    %8 = tpu.concatenate %3, %7 in 1 : vector<2x16xf32>, vector<2x16xf32> -> vector<2x32xf32>
    %9 = arith.truncf %8 : vector<2x32xf32> to vector<2x32xbf16>
    %c0_4 = arith.constant 0 : index
    %c0_5 = arith.constant 0 : index
    %10 = vector.load %arg3[%c0_4, %c0_5] : memref<32x256xbf16, #tpu.memory_space<vmem>>, vector<32x256xbf16>
    %cst_6 = arith.constant dense<0.000000e+00> : vector<2x256xf32>
    %11 = tpu.matmul %9, %10, %cst_6 {dimension_numbers = #tpu.dot_dimension_numbers<[1], [0], [0], [1], [0, 0, 1, 1], [], []>} : vector<2x32xbf16>, vector<32x256xbf16>, vector<2x256xf32> -> vector<2x256xf32>
    %c0_7 = arith.constant 0 : index
    %c0_8 = arith.constant 0 : index
    %12 = vector.load %arg4[%c0_7, %c0_8] : memref<1x256xf32, #tpu.memory_space<vmem>>, vector<1x256xf32>
    %13 = vector.broadcast %12 : vector<1x256xf32> to vector<2x256xf32>
    %14 = arith.addf %11, %13 : vector<2x256xf32>
    %15 = vector.extract_strided_slice %14 {offsets = [0, 0], sizes = [2, 128], strides = [1, 1]} : vector<2x256xf32> to vector<2x128xf32>
    %16 = arith.negf %15 : vector<2x128xf32>
    %17 = math.exp %16 : vector<2x128xf32>
    %cst_9 = arith.constant 1.000000e+00 : f32
    %18 = vector.broadcast %cst_9 : f32 to vector<2x128xf32>
    %19 = arith.addf %18, %17 : vector<2x128xf32>
    %20 = arith.divf %18, %19 : vector<2x128xf32>
    %21 = vector.extract_strided_slice %14 {offsets = [0, 128], sizes = [2, 128], strides = [1, 1]} : vector<2x256xf32> to vector<2x128xf32>
    %22 = arith.mulf %20, %21 : vector<2x128xf32>
    %cst_10 = arith.constant 0.000000e+00 : f32
    %23 = vector.broadcast %cst_10 : f32 to vector<2x128xf32>
    %24 = arith.maximumf %22, %23 : vector<2x128xf32>
    %25 = arith.truncf %24 : vector<2x128xf32> to vector<2x128xbf16>
    %c0_11 = arith.constant 0 : index
    %c0_12 = arith.constant 0 : index
    %26 = vector.load %arg5[%c0_11, %c0_12] : memref<128x128xbf16, #tpu.memory_space<vmem>>, vector<128x128xbf16>
    %cst_13 = arith.constant dense<0.000000e+00> : vector<2x128xf32>
    %27 = tpu.matmul %25, %26, %cst_13 {dimension_numbers = #tpu.dot_dimension_numbers<[1], [0], [0], [1], [0, 0, 1, 1], [], []>} : vector<2x128xbf16>, vector<128x128xbf16>, vector<2x128xf32> -> vector<2x128xf32>
    %c0_14 = arith.constant 0 : index
    %c0_15 = arith.constant 0 : index
    %28 = vector.load %arg6[%c0_14, %c0_15] : memref<1x128xf32, #tpu.memory_space<vmem>>, vector<1x128xf32>
    %29 = vector.broadcast %28 : vector<1x128xf32> to vector<2x128xf32>
    %30 = arith.addf %27, %29 : vector<2x128xf32>
    %cst_16 = arith.constant 0.000000e+00 : f32
    %31 = vector.broadcast %cst_16 : f32 to vector<2x128xf32>
    %32 = arith.maximumf %30, %31 : vector<2x128xf32>
    %33 = arith.truncf %32 : vector<2x128xf32> to vector<2x128xbf16>
    %c0_17 = arith.constant 0 : index
    %c0_18 = arith.constant 0 : index
    %34 = vector.load %arg7[%c0_17, %c0_18] : memref<128x128xbf16, #tpu.memory_space<vmem>>, vector<128x128xbf16>
    %cst_19 = arith.constant dense<0.000000e+00> : vector<2x128xf32>
    %35 = tpu.matmul %33, %34, %cst_19 {dimension_numbers = #tpu.dot_dimension_numbers<[1], [0], [0], [1], [0, 0, 1, 1], [], []>} : vector<2x128xbf16>, vector<128x128xbf16>, vector<2x128xf32> -> vector<2x128xf32>
    %c0_20 = arith.constant 0 : index
    %c0_21 = arith.constant 0 : index
    %36 = vector.load %arg8[%c0_20, %c0_21] : memref<1x128xf32, #tpu.memory_space<vmem>>, vector<1x128xf32>
    %37 = vector.broadcast %36 : vector<1x128xf32> to vector<2x128xf32>
    %38 = arith.addf %35, %37 : vector<2x128xf32>
    %c0_22 = arith.constant 0 : index
    %c0_23 = arith.constant 0 : index
    %39 = vector.load %arg9[%c0_22, %c0_23] : memref<2x128xf32, #tpu.memory_space<vmem>>, vector<2x128xf32>
    tpu.vector_store %arg9[%c0_22, %c0_23], %38 {strides = array<i32>} : memref<2x128xf32, #tpu.memory_space<vmem>>, vector<2x128xf32>,
    return
  }
  func.func @transform_0(%arg0: i32) -> (i32, i32) {
    %c0_i32 = arith.constant 0 : i32
    %c0_i32_0 = arith.constant 0 : i32
    return %arg0, %c0_i32 : i32, i32
  }
  func.func @transform_1(%arg0: i32) -> (i32, i32) {
    %c0_i32 = arith.constant 0 : i32
    %c0_i32_0 = arith.constant 0 : i32
    return %arg0, %c0_i32 : i32, i32
  }
  func.func @transform_2(%arg0: i32) -> (i32, i32) {
    %c0_i32 = arith.constant 0 : i32
    %c0_i32_0 = arith.constant 0 : i32
    %c0_i32_1 = arith.constant 0 : i32
    return %c0_i32, %c0_i32_0 : i32, i32
  }
  func.func @transform_3(%arg0: i32) -> (i32, i32) {
    %c0_i32 = arith.constant 0 : i32
    %c0_i32_0 = arith.constant 0 : i32
    %c0_i32_1 = arith.constant 0 : i32
    return %c0_i32, %c0_i32_0 : i32, i32
  }
  func.func @transform_4(%arg0: i32) -> (i32, i32) {
    %c0_i32 = arith.constant 0 : i32
    %c0_i32_0 = arith.constant 0 : i32
    %c0_i32_1 = arith.constant 0 : i32
    return %c0_i32, %c0_i32_0 : i32, i32
  }
  func.func @transform_5(%arg0: i32) -> (i32, i32) {
    %c0_i32 = arith.constant 0 : i32
    %c0_i32_0 = arith.constant 0 : i32
    %c0_i32_1 = arith.constant 0 : i32
    return %c0_i32, %c0_i32_0 : i32, i32
  }
  func.func @transform_6(%arg0: i32) -> (i32, i32) {
    %c0_i32 = arith.constant 0 : i32
    %c0_i32_0 = arith.constant 0 : i32
    %c0_i32_1 = arith.constant 0 : i32
    return %c0_i32, %c0_i32_0 : i32, i32
  }
  func.func @transform_7(%arg0: i32) -> (i32, i32) {
    %c0_i32 = arith.constant 0 : i32
    %c0_i32_0 = arith.constant 0 : i32
    %c0_i32_1 = arith.constant 0 : i32
    return %c0_i32, %c0_i32_0 : i32, i32
  }
  func.func @transform_8(%arg0: i32) -> (i32, i32) {
    %c0_i32 = arith.constant 0 : i32
    %c0_i32_0 = arith.constant 0 : i32
    return %arg0, %c0_i32 : i32, i32
  }
}

</mosaic_0001>

<llo_original>
// kernel: tpu_custom_call.1
$region0: #{tpu_custom_call.1}
  #allocation0 [shape = 'u32[]', space=smem, size = 0x4, offset = 0x4, fixed_abs, tag = 'smem constant byte address 0x4 - core index']
  #allocation1 [shape = 'u32[144,128]{1,0:T(1,128)}', space=vmem, size = 0x12000, scoped, tag = 'internal scratch']
  %s0 = inlined_call_operand.hbm [shape: bf16[2,16], index: 0, kind: input, shape index: {}]
  %s1 = inlined_call_operand.vmem [shape: bf16[2,16], index: 1, kind: input, shape index: {}]
  %s2 = inlined_call_operand.hbm [shape: bf16[32,256], index: 2, kind: input, shape index: {}]
  %s3 = inlined_call_operand.vmem [shape: f32[1,256], index: 3, kind: input, shape index: {}]
  %s4 = inlined_call_operand.hbm [shape: bf16[128,128], index: 4, kind: input, shape index: {}]
  %s5 = inlined_call_operand.vmem [shape: f32[1,128], index: 5, kind: input, shape index: {}]
  %s6 = inlined_call_operand.hbm [shape: bf16[128,128], index: 6, kind: input, shape index: {}]
  %s7 = inlined_call_operand.vmem [shape: f32[1,128], index: 7, kind: input, shape index: {}]
  %s8 = inlined_call_operand.hbm [shape: f32[2,128], index: 8, kind: output, shape index: {}]
  %s9 = sld [smem:[#allocation0]]
  $region58: #{tpu_custom_call.1} parent=0
    _
  %s11 = ssub.s32 1, %s9
  %s12 = scalar_select 0, %s11, %s9
  $region1: #{tpu_custom_call.1} parent=0
    #allocation2 [shape = 'u8[512]{0}', space=vmem, size = 0x400, scoped, tag = 'input window, operand 0, single buffered']
    #allocation3 [shape = 's32[1]{0}', space=sflag, size = 0x4, scoped, tag = 'scoped memory for tpu_custom_call.1']
    #allocation4 [shape = 's32[1]{0}', space=sflag, size = 0x4, scoped, tag = 'scoped memory for tpu_custom_call.1']
    #allocation5 [shape = 'u8[16384]{0}', space=vmem, size = 0x4000, scoped, tag = 'input window, operand 2, single buffered']
    #allocation6 [shape = 's32[1]{0}', space=sflag, size = 0x4, scoped, tag = 'scoped memory for tpu_custom_call.1']
    #allocation7 [shape = 'u8[32768]{0}', space=vmem, size = 0x8000, scoped, tag = 'input window, operand 4, single buffered']
    #allocation8 [shape = 'u8[32768]{0}', space=vmem, size = 0x8000, scoped, tag = 'input window, operand 6, single buffered']
    #allocation9 [shape = 's32[1]{0}', space=sflag, size = 0x4, scoped, tag = 'scoped memory for tpu_custom_call.1']
    #allocation10 [shape = 'u8[1024]{0}', space=vmem, size = 0x400, scoped, tag = 'output window, operand 0, single buffered']
    %13 = vsyncpa [#allocation3], 0
    %14 = vsyncpa [#allocation6], 0
    %15 = vsyncpa [#allocation9], 0
    %16 = vsyncpa [#allocation4], 0
    // Predicated region
    $region2: #{tpu_custom_call.1} parent=1 // pred_check
      _
    $region3: #{tpu_custom_call.1} parent=1 // pred_check_branch
      %18 = sbr.rel (0) target = $region5
    $region4: #{tpu_custom_call.1} parent=1 // pred_region
      %s20 = ssub.s32 16, 16
      %21 = vsyncadd [#allocation3], %s20
      %s23 = sshll.u32 [#allocation2], 4
      %s24 = int_to_ptr.vmem [resolvable:$true] %s23
      %26 = dma.hbm_to_vmem [thread:$0]  %s0, 16, %s24, [#allocation3]
    $region5: #{tpu_custom_call.1} parent=1 // pred_fallthru
      _
    // Predicated region
    $region6: #{tpu_custom_call.1} parent=1 // pred_check
      _
    $region7: #{tpu_custom_call.1} parent=1 // pred_check_branch
      %28 = sbr.rel (0) target = $region9
    $region8: #{tpu_custom_call.1} parent=1 // pred_region
      _
    $region9: #{tpu_custom_call.1} parent=1 // pred_fallthru
      _
    // Predicated region
    $region10: #{tpu_custom_call.1} parent=1 // pred_check
      _
    $region11: #{tpu_custom_call.1} parent=1 // pred_check_branch
      %30 = sbr.rel (0) target = $region13
    $region12: #{tpu_custom_call.1} parent=1 // pred_region
      %s32 = ssub.s32 512, 512
      %33 = vsyncadd [#allocation6], %s32
      %s34 = sshll.u32 [#allocation5], 4
      %s35 = int_to_ptr.vmem [resolvable:$true] %s34
      %40 = dma.hbm_to_vmem [thread:$0]  %s2, 512, %s35, [#allocation6], 128, 128, 8
    $region13: #{tpu_custom_call.1} parent=1 // pred_fallthru
      _
    // Predicated region
    $region14: #{tpu_custom_call.1} parent=1 // pred_check
      _
    $region15: #{tpu_custom_call.1} parent=1 // pred_check_branch
      %42 = sbr.rel (0) target = $region17
    $region16: #{tpu_custom_call.1} parent=1 // pred_region
      _
    $region17: #{tpu_custom_call.1} parent=1 // pred_fallthru
      _
    // Predicated region
    $region18: #{tpu_custom_call.1} parent=1 // pred_check
      _
    $region19: #{tpu_custom_call.1} parent=1 // pred_check_branch
      %44 = sbr.rel (0) target = $region21
    $region20: #{tpu_custom_call.1} parent=1 // pred_region
      %s46 = ssub.s32 1024, 1024
      %47 = vsyncadd [#allocation6], %s46
      %s48 = sshll.u32 [#allocation7], 4
      %s49 = int_to_ptr.vmem [resolvable:$true] %s48
      %54 = dma.hbm_to_vmem [thread:$0]  %s4, 1024, %s49, [#allocation6], 64, 64, 4
    $region21: #{tpu_custom_call.1} parent=1 // pred_fallthru
      _
    // Predicated region
    $region22: #{tpu_custom_call.1} parent=1 // pred_check
      _
    $region23: #{tpu_custom_call.1} parent=1 // pred_check_branch
      %56 = sbr.rel (0) target = $region25
    $region24: #{tpu_custom_call.1} parent=1 // pred_region
      _
    $region25: #{tpu_custom_call.1} parent=1 // pred_fallthru
      _
    // Predicated region
    $region26: #{tpu_custom_call.1} parent=1 // pred_check
      _
    $region27: #{tpu_custom_call.1} parent=1 // pred_check_branch
      %58 = sbr.rel (0) target = $region29
    $region28: #{tpu_custom_call.1} parent=1 // pred_region
      %s60 = ssub.s32 1024, 1024
      %61 = vsyncadd [#allocation9], %s60
      %s62 = sshll.u32 [#allocation8], 4
      %s63 = int_to_ptr.vmem [resolvable:$true] %s62
      %68 = dma.hbm_to_vmem [thread:$0]  %s6, 1024, %s63, [#allocation9], 64, 64, 4
    $region29: #{tpu_custom_call.1} parent=1 // pred_fallthru
      _
    // Predicated region
    $region30: #{tpu_custom_call.1} parent=1 // pred_check
      _
    $region31: #{tpu_custom_call.1} parent=1 // pred_check_branch
      %70 = sbr.rel (0) target = $region33
    $region32: #{tpu_custom_call.1} parent=1 // pred_region
      _
    $region33: #{tpu_custom_call.1} parent=1 // pred_fallthru
      _
    // Predicated region
    $region34: #{tpu_custom_call.1} parent=1 // pred_check
      _
    $region35: #{tpu_custom_call.1} parent=1 // pred_check_branch
      %72 = sbr.rel (0) target = $region37
    $region36: #{tpu_custom_call.1} parent=1 // pred_region
      %73 = dma.done [#allocation3], 16
    $region37: #{tpu_custom_call.1} parent=1 // pred_fallthru
      _
    // Predicated region
    $region38: #{tpu_custom_call.1} parent=1 // pred_check
      _
    $region39: #{tpu_custom_call.1} parent=1 // pred_check_branch
      %75 = sbr.rel (0) target = $region41
    $region40: #{tpu_custom_call.1} parent=1 // pred_region
      %76 = dma.done [#allocation6], 512
    $region41: #{tpu_custom_call.1} parent=1 // pred_fallthru
      _
    // Predicated region
    $region42: #{tpu_custom_call.1} parent=1 // pred_check
      _
    $region43: #{tpu_custom_call.1} parent=1 // pred_check_branch
      %78 = sbr.rel (0) target = $region45
    $region44: #{tpu_custom_call.1} parent=1 // pred_region
      %79 = dma.done [#allocation6], 1024
    $region45: #{tpu_custom_call.1} parent=1 // pred_fallthru
      _
    // Predicated region
    $region46: #{tpu_custom_call.1} parent=1 // pred_check
      _
    $region47: #{tpu_custom_call.1} parent=1 // pred_check_branch
      %81 = sbr.rel (0) target = $region49
    $region48: #{tpu_custom_call.1} parent=1 // pred_region
      %82 = dma.done [#allocation9], 1024
    $region49: #{tpu_custom_call.1} parent=1 // pred_fallthru
      _
    %v84 = vld [vmem:[#allocation2] sm:$0x1]
    %v85 = vunpack.c.l.bf16 %v84
    %v86 = vmax.f32 %v85, 0.0
    %v87 = vld [vmem:[%s1] sm:$0x1]
    %v88 = vunpack.c.l.bf16 %v87
    %v89 = vmax.f32 %v88, 0.0
    %v92 = vunpack.c.l.s4 1983009808
    %v93 = vunpack.c.0.s8 %v92
    %v94 = vlaneseq
    %v95 = vshrl.u32 %v94, 7
    %v96 = vsub.s32 %v93, %v95
    %v97 = vrot.slane %v89, %v96
    %98 = vrot.lane.b32.xlu0 %v97, 16
    %v99 = vpop.permute.xlu0 %98
    %vm101 = vcmask 130048
    %v102 = vsel %vm101, %v86, %v99
    %v103 = vpack.c.bf16 %v102, %v102
    %v104 = vld [vmem:[#allocation5] sm:$0xff]
    %v105 = vld [vmem:[#allocation5 + $0x8] sm:$0xff]
    %v106 = vld [vmem:[#allocation5 + $0x10] sm:$0xff]
    %v107 = vld [vmem:[#allocation5 + $0x18] sm:$0xff]
    %v108 = vld [vmem:[%s3] sm:$0x3]
    %v110 = vlaneseq
    %v111 = vshrl.u32 %v110, 7
    %v112 = vsub.s32 0, %v111
    %v113 = vrot.slane %v108, %v112
    %v114 = vlaneseq
    %v115 = vshrl.u32 %v114, 7
    %v116 = vsub.s32 1, %v115
    %v117 = vrot.slane %v108, %v116
    %v124 = vunpack.c.l.b16 %v104
    %v125 = vunpack.c.h.b16 %v104
    %v126 = vunpack.c.l.b16 %v105
    %v127 = vunpack.c.h.b16 %v105
    %v128 = vunpack.c.l.b16 %v106
    %v129 = vunpack.c.h.b16 %v106
    %v130 = vunpack.c.l.b16 %v107
    %v131 = vunpack.c.h.b16 %v107
    %v132 = vpack.c.b16 %v126, %v124
    %v133 = vpack.c.b16 %v127, %v125
    %v134 = vpack.c.b16 %v130, %v128
    %v135 = vpack.c.b16 %v131, %v129
    %vm140 = vcmask 261120
    %v142 = vsel %vm140, %v103, 0
    %144 = vmatprep.subr.bf16.mxu0 %v133
    %145 = vmatpush1.bf16.msra.mxu0 %v132
    %146 = vmatprep.subr.bf16.mxu0 %v135
    %147 = vmatpush1.bf16.msra.mxu0 %v134
    %148 = vmatprep.subr.bf16.mxu0 0
    %149 = vmatpush1.bf16.msra.mxu0 0
    %150 = vmatprep.subr.bf16.mxu0 0
    %151 = vmatpush1.bf16.msra.mxu0 0
    %152 = vmatprep.subr.bf16.mxu0 0
    %153 = vmatpush1.bf16.msra.mxu0 0
    %154 = vmatprep.subr.bf16.mxu0 0
    %155 = vmatpush1.bf16.msra.mxu0 0
    %156 = vmatprep.subr.bf16.mxu0 0
    %157 = vmatpush1.bf16.msra.mxu0 0
    %158 = vmatprep.subr.bf16.mxu0 0
    %159 = vmatpush1.bf16.msra.mxu0 0
    %160 = vmatprep.subr.bf16.mxu0 0
    %161 = vmatpush1.bf16.msra.mxu0 0
    %162 = vmatprep.subr.bf16.mxu0 0
    %163 = vmatpush1.bf16.msra.mxu0 0
    %164 = vmatprep.subr.bf16.mxu0 0
    %165 = vmatpush1.bf16.msra.mxu0 0
    %166 = vmatprep.subr.bf16.mxu0 0
    %167 = vmatpush1.bf16.msra.mxu0 0
    %168 = vmatprep.subr.bf16.mxu0 0
    %169 = vmatpush1.bf16.msra.mxu0 0
    %170 = vmatprep.subr.bf16.mxu0 0
    %171 = vmatpush1.bf16.msra.mxu0 0
    %172 = vmatprep.subr.bf16.mxu0 0
    %173 = vmatpush1.bf16.msra.mxu0 0
    %174 = vmatprep.subr.bf16.mxu0 0
    %175 = vmatpush1.bf16.msra.mxu0 0
    %176 = vmatprep.mubr.bf16.mxu0 0
    %177 = vmatmul.mubr.bf16.gmra.mrb[0].mxu0 %v142
    %v178 = vpop.f32.mrb[0].mxu0
    %v179 = vadd.f32 %v113, %v178
    %v180 = vpop.f32.mrb[0].mxu0
    %v181 = vadd.f32 %v117, %v180
    %v182 = vpop.f32.mrb[0].mxu0
    %v183 = vpop.f32.mrb[0].mxu0
    %184 = vdwg.mxu0
    %v185 = vxor.u32 %v179, 2147483648
    %v186 = vmul.f32 %v185, 1.442695
    %v187 = vpow.pop %v186
    %v188 = vadd.f32 %v187, 1.0
    %v189 = vrcp.pop %v188
    %v190 = vmul.f32 1.0, %v189
    %v191 = vmul.f32 %v190, %v181
    %v192 = vmax.f32 %v191, 0.0
    %v193 = vpack.c.bf16 %v192, %v192
    %v194 = vld [vmem:[#allocation7] sm:$0xf]
    %v195 = vld [vmem:[#allocation7 + $0x4] sm:$0xf]
    %v196 = vld [vmem:[#allocation7 + $0x8] sm:$0xf]
    %v197 = vld [vmem:[#allocation7 + $0xc] sm:$0xf]
    %v198 = vld [vmem:[#allocation7 + $0x10] sm:$0xf]
    %v199 = vld [vmem:[#allocation7 + $0x14] sm:$0xf]
    %v200 = vld [vmem:[#allocation7 + $0x18] sm:$0xf]
    %v201 = vld [vmem:[#allocation7 + $0x1c] sm:$0xf]
    %v202 = vld [vmem:[#allocation7 + $0x20] sm:$0xf]
    %v203 = vld [vmem:[#allocation7 + $0x24] sm:$0xf]
    %v204 = vld [vmem:[#allocation7 + $0x28] sm:$0xf]
    %v205 = vld [vmem:[#allocation7 + $0x2c] sm:$0xf]
    %v206 = vld [vmem:[#allocation7 + $0x30] sm:$0xf]
    %v207 = vld [vmem:[#allocation7 + $0x34] sm:$0xf]
    %v208 = vld [vmem:[#allocation7 + $0x38] sm:$0xf]
    %v209 = vld [vmem:[#allocation7 + $0x3c] sm:$0xf]
    %v210 = vld [vmem:[%s5] sm:$0x1]
    %v212 = vlaneseq
    %v213 = vshrl.u32 %v212, 7
    %v214 = vsub.s32 0, %v213
    %v215 = vrot.slane %v210, %v214
    %v233 = vunpack.c.l.b16 %v194
    %v234 = vunpack.c.l.b16 %v195
    %v235 = vunpack.c.l.b16 %v196
    %v236 = vunpack.c.l.b16 %v197
    %v237 = vunpack.c.l.b16 %v198
    %v238 = vunpack.c.l.b16 %v199
    %v239 = vunpack.c.l.b16 %v200
    %v240 = vunpack.c.l.b16 %v201
    %v241 = vunpack.c.l.b16 %v202
    %v242 = vunpack.c.l.b16 %v203
    %v243 = vunpack.c.l.b16 %v204
    %v244 = vunpack.c.l.b16 %v205
    %v245 = vunpack.c.l.b16 %v206
    %v246 = vunpack.c.l.b16 %v207
    %v247 = vunpack.c.l.b16 %v208
    %v248 = vunpack.c.l.b16 %v209
    %v249 = vpack.c.b16 %v234, %v233
    %v250 = vpack.c.b16 %v236, %v235
    %v251 = vpack.c.b16 %v238, %v237
    %v252 = vpack.c.b16 %v240, %v239
    %v253 = vpack.c.b16 %v242, %v241
    %v254 = vpack.c.b16 %v244, %v243
    %v255 = vpack.c.b16 %v246, %v245
    %v256 = vpack.c.b16 %v248, %v247
    %265 = vmatprep.subr.bf16.mxu0 0
    %266 = vmatpush1.bf16.msra.mxu0 %v249
    %267 = vmatprep.subr.bf16.mxu0 0
    %268 = vmatpush1.bf16.msra.mxu0 %v250
    %269 = vmatprep.subr.bf16.mxu0 0
    %270 = vmatpush1.bf16.msra.mxu0 %v251
    %271 = vmatprep.subr.bf16.mxu0 0
    %272 = vmatpush1.bf16.msra.mxu0 %v252
    %273 = vmatprep.subr.bf16.mxu0 0
    %274 = vmatpush1.bf16.msra.mxu0 %v253
    %275 = vmatprep.subr.bf16.mxu0 0
    %276 = vmatpush1.bf16.msra.mxu0 %v254
    %277 = vmatprep.subr.bf16.mxu0 0
    %278 = vmatpush1.bf16.msra.mxu0 %v255
    %279 = vmatprep.subr.bf16.mxu0 0
    %280 = vmatpush1.bf16.msra.mxu0 %v256
    %281 = vmatprep.subr.bf16.mxu0 0
    %282 = vmatpush1.bf16.msra.mxu0 0
    %283 = vmatprep.subr.bf16.mxu0 0
    %284 = vmatpush1.bf16.msra.mxu0 0
    %285 = vmatprep.subr.bf16.mxu0 0
    %286 = vmatpush1.bf16.msra.mxu0 0
    %287 = vmatprep.subr.bf16.mxu0 0
    %288 = vmatpush1.bf16.msra.mxu0 0
    %289 = vmatprep.subr.bf16.mxu0 0
    %290 = vmatpush1.bf16.msra.mxu0 0
    %291 = vmatprep.subr.bf16.mxu0 0
    %292 = vmatpush1.bf16.msra.mxu0 0
    %293 = vmatprep.subr.bf16.mxu0 0
    %294 = vmatpush1.bf16.msra.mxu0 0
    %295 = vmatprep.subr.bf16.mxu0 0
    %296 = vmatpush1.bf16.msra.mxu0 0
    %297 = vmatprep.mubr.bf16.mxu0 0
    %298 = vmatmul.mubr.bf16.gmra.mrb[0].mxu0 %v193
    %v299 = vpop.f32.mrb[0].mxu0
    %v300 = vadd.f32 %v215, %v299
    %v301 = vpop.f32.mrb[0].mxu0
    %v302 = vpop.f32.mrb[0].mxu0
    %v303 = vpop.f32.mrb[0].mxu0
    %304 = vdwg.mxu0
    %v305 = vmax.f32 %v300, 0.0
    %v306 = vpack.c.bf16 %v305, %v305
    %v307 = vld [vmem:[#allocation8] sm:$0xf]
    %v308 = vld [vmem:[#allocation8 + $0x4] sm:$0xf]
    %v309 = vld [vmem:[#allocation8 + $0x8] sm:$0xf]
    %v310 = vld [vmem:[#allocation8 + $0xc] sm:$0xf]
    %v311 = vld [vmem:[#allocation8 + $0x10] sm:$0xf]
    %v312 = vld [vmem:[#allocation8 + $0x14] sm:$0xf]
    %v313 = vld [vmem:[#allocation8 + $0x18] sm:$0xf]
    %v314 = vld [vmem:[#allocation8 + $0x1c] sm:$0xf]
    %v315 = vld [vmem:[#allocation8 + $0x20] sm:$0xf]
    %v316 = vld [vmem:[#allocation8 + $0x24] sm:$0xf]
    %v317 = vld [vmem:[#allocation8 + $0x28] sm:$0xf]
    %v318 = vld [vmem:[#allocation8 + $0x2c] sm:$0xf]
    %v319 = vld [vmem:[#allocation8 + $0x30] sm:$0xf]
    %v320 = vld [vmem:[#allocation8 + $0x34] sm:$0xf]
    %v321 = vld [vmem:[#allocation8 + $0x38] sm:$0xf]
    %v322 = vld [vmem:[#allocation8 + $0x3c] sm:$0xf]
    %v323 = vld [vmem:[%s7] sm:$0x1]
    %v325 = vlaneseq
    %v326 = vshrl.u32 %v325, 7
    %v327 = vsub.s32 0, %v326
    %v328 = vrot.slane %v323, %v327
    %v346 = vunpack.c.l.b16 %v307
    %v347 = vunpack.c.l.b16 %v308
    %v348 = vunpack.c.l.b16 %v309
    %v349 = vunpack.c.l.b16 %v310
    %v350 = vunpack.c.l.b16 %v311
    %v351 = vunpack.c.l.b16 %v312
    %v352 = vunpack.c.l.b16 %v313
    %v353 = vunpack.c.l.b16 %v314
    %v354 = vunpack.c.l.b16 %v315
    %v355 = vunpack.c.l.b16 %v316
    %v356 = vunpack.c.l.b16 %v317
    %v357 = vunpack.c.l.b16 %v318
    %v358 = vunpack.c.l.b16 %v319
    %v359 = vunpack.c.l.b16 %v320
    %v360 = vunpack.c.l.b16 %v321
    %v361 = vunpack.c.l.b16 %v322
    %v362 = vpack.c.b16 %v347, %v346
    %v363 = vpack.c.b16 %v349, %v348
    %v364 = vpack.c.b16 %v351, %v350
    %v365 = vpack.c.b16 %v353, %v352
    %v366 = vpack.c.b16 %v355, %v354
    %v367 = vpack.c.b16 %v357, %v356
    %v368 = vpack.c.b16 %v359, %v358
    %v369 = vpack.c.b16 %v361, %v360
    %378 = vmatprep.subr.bf16.mxu0 0
    %379 = vmatpush1.bf16.msra.mxu0 %v362
    %380 = vmatprep.subr.bf16.mxu0 0
    %381 = vmatpush1.bf16.msra.mxu0 %v363
    %382 = vmatprep.subr.bf16.mxu0 0
    %383 = vmatpush1.bf16.msra.mxu0 %v364
    %384 = vmatprep.subr.bf16.mxu0 0
    %385 = vmatpush1.bf16.msra.mxu0 %v365
    %386 = vmatprep.subr.bf16.mxu0 0
    %387 = vmatpush1.bf16.msra.mxu0 %v366
    %388 = vmatprep.subr.bf16.mxu0 0
    %389 = vmatpush1.bf16.msra.mxu0 %v367
    %390 = vmatprep.subr.bf16.mxu0 0
    %391 = vmatpush1.bf16.msra.mxu0 %v368
    %392 = vmatprep.subr.bf16.mxu0 0
    %393 = vmatpush1.bf16.msra.mxu0 %v369
    %394 = vmatprep.subr.bf16.mxu0 0
    %395 = vmatpush1.bf16.msra.mxu0 0
    %396 = vmatprep.subr.bf16.mxu0 0
    %397 = vmatpush1.bf16.msra.mxu0 0
    %398 = vmatprep.subr.bf16.mxu0 0
    %399 = vmatpush1.bf16.msra.mxu0 0
    %400 = vmatprep.subr.bf16.mxu0 0
    %401 = vmatpush1.bf16.msra.mxu0 0
    %402 = vmatprep.subr.bf16.mxu0 0
    %403 = vmatpush1.bf16.msra.mxu0 0
    %404 = vmatprep.subr.bf16.mxu0 0
    %405 = vmatpush1.bf16.msra.mxu0 0
    %406 = vmatprep.subr.bf16.mxu0 0
    %407 = vmatpush1.bf16.msra.mxu0 0
    %408 = vmatprep.subr.bf16.mxu0 0
    %409 = vmatpush1.bf16.msra.mxu0 0
    %410 = vmatprep.mubr.bf16.mxu0 0
    %411 = vmatmul.mubr.bf16.gmra.mrb[0].mxu0 %v306
    %v412 = vpop.f32.mrb[0].mxu0
    %v413 = vadd.f32 %v328, %v412
    %v414 = vpop.f32.mrb[0].mxu0
    %v415 = vpop.f32.mrb[0].mxu0
    %v416 = vpop.f32.mrb[0].mxu0
    %417 = vdwg.mxu0
    %418 = vst [vmem:[#allocation10] sm:$0x3] %v413
    // Predicated region
    $region50: #{tpu_custom_call.1} parent=1 // pred_check
      _
    $region51: #{tpu_custom_call.1} parent=1 // pred_check_branch
      %420 = sbr.rel (0) target = $region53
    $region52: #{tpu_custom_call.1} parent=1 // pred_region
      %s422 = ssub.s32 32, 32
      %423 = vsyncadd [#allocation4], %s422
      %s425 = sshll.u32 [#allocation10], 4
      %s426 = int_to_ptr.vmem [resolvable:$true] %s425
      %428 = dma.vmem_to_hbm [thread:$0]  %s426, 32, %s8, [#allocation4]
    $region53: #{tpu_custom_call.1} parent=1 // pred_fallthru
      _
    // Predicated region
    $region54: #{tpu_custom_call.1} parent=1 // pred_check
      _
    $region55: #{tpu_custom_call.1} parent=1 // pred_check_branch
      %430 = sbr.rel (0) target = $region57
    $region56: #{tpu_custom_call.1} parent=1 // pred_region
      %431 = dma.done [#allocation4], 32
    $region57: #{tpu_custom_call.1} parent=1 // pred_fallthru
      _
    %432 = vsyncpa [#allocation3], 1
    %433 = vsyncpa [#allocation6], 1
    %434 = vsyncpa [#allocation9], 1
    %435 = vsyncpa [#allocation4], 1

</llo_original>
